<compile_context>
chip_gen: v6e
topology: v6e:2x2x1
jax: 0.10.0
libtpu: 0.0.40
codegen_flags: <defaults>
</compile_context>

<pallas_src>
import jax
import jax.numpy as jnp
from jax.experimental import pallas as pl
from jax.experimental.pallas import tpu as pltpu


# ---------------------------------------------------------------------------
# Kernel
# ---------------------------------------------------------------------------
def _make_kernel(native_low_precision: bool):
    """Rank-1 Householder reflection on one (TILE_B, Dp) block of x."""

    def kernel(scale_ref, v_ref, x_ref, o_ref):
        scale = scale_ref[0, 0]                       # 2 / ||v||^2  (f32, SMEM)
        if native_low_precision:
            # bf16-native math (v6e/v7x VPU); only the row-dot accumulates f32.
            x = x_ref[...]                            # (TB, Dp) bf16
            v = v_ref[...]                            # (1, Dp)  bf16
            t = jnp.sum((x * v).astype(jnp.float32), axis=-1, keepdims=True)
            o_ref[...] = (x - (scale * t).astype(x.dtype) * v).astype(o_ref.dtype)
        else:
            # f32 path (no-op casts for f32 inputs; required upcast on v5e bf16).
            x = x_ref[...].astype(jnp.float32)
            v = v_ref[...].astype(jnp.float32)
            t = jnp.sum(x * v, axis=-1, keepdims=True)
            o_ref[...] = (x - (scale * t) * v).astype(o_ref.dtype)

    return kernel


# ---------------------------------------------------------------------------
# Generation / tiling helpers
# ---------------------------------------------------------------------------
def _tpu_generation():
    try:
        kind = jax.devices()[0].device_kind.lower()
    except Exception:  # pragma: no cover - defensive (interpret mode, CPU, ...)
        return "unknown"
    if "v7" in kind or "7x" in kind:
        return "v7x"
    if "v6" in kind:
        return "v6e"
    if "v5" in kind:
        return "v5e"
    return "unknown"


def _sublane(itemsize):
    return {4: 8, 2: 16, 1: 32}.get(itemsize, 8)


def _vmem_budgets(gen):
    """(live-buffer budget, vmem_limit_bytes) per generation."""
    if gen in ("v5e", "v6e"):
        return 88 * 1024 * 1024, 100 * 1024 * 1024   # 128 MiB physical
    # v7x has 64 MiB physical VMEM; unknown chips get the conservative budget.
    return 40 * 1024 * 1024, 48 * 1024 * 1024


def _pick_tile_b(B, Dp, itemsize, gen):
    """Largest batch tile s.t. 4 live buffers (double-buffered x-in + out)
    fit the generation's VMEM budget; sublane-aligned; >=2 grid steps on v7x."""
    sub = _sublane(itemsize)
    buf_budget, _ = _vmem_budgets(gen)
    rows = buf_budget // max(1, 4 * Dp * itemsize)
    rows = max(sub, (rows // sub) * sub)
    if gen == "v7x" and B > sub:
        # Cap tile so the "parallel" batch axis splits across both TensorCores.
        half = pl.cdiv(B, 2)
        half = pl.cdiv(half, sub) * sub
        rows = min(rows, half)
    if rows >= B:
        return B  # single full-extent block (always layout-legal)
    return rows


# ---------------------------------------------------------------------------
# Wrapper
# ---------------------------------------------------------------------------
def _householder_rank1_jnp(x, v):
    """Fused plain-JAX path for tiny problems (launch overhead dominates)."""
    xf = x.astype(jnp.float32)
    vf = v.astype(jnp.float32)
    scale = 2.0 / jnp.sum(vf * vf)
    t = jnp.sum(xf * vf, axis=-1, keepdims=True)
    return (xf - scale * t * vf).astype(x.dtype)


def householder_flow(x, v, *, force_pallas=False):
    """Pallas implementation of HouseholderFlow.forward.

    Args:
      x: (B, D) input.
      v: (1, D) Householder vector parameter.
      force_pallas: run the Pallas kernel even for tiny problems (demo/testing).
    Returns:
      (transformed x of shape (B, D), log-det of Jacobian == 0)
    """
    B, D = x.shape
    itemsize = jnp.dtype(x.dtype).itemsize
    logdet = jnp.zeros((), dtype=jnp.float32)

    # Tiny-problem fallback: <1 MiB of data is cheaper as a fused XLA op.
    if not force_pallas and B * D * itemsize < (1 << 20):
        return _householder_rank1_jnp(x, v), logdet

    gen = _tpu_generation()
    _, vmem_limit = _vmem_budgets(gen)

    # Hoisted v-only work: one tiny reduce in plain JAX, done once.
    # TODO(synk): no epsilon on v_sqr (matches the PyTorch module); a learned v
    # collapsing to ~0 produces Inf/NaN here just like in PyTorch.
    v_f32 = v.astype(jnp.float32)
    v_sqr = jnp.sum(v_f32 * v_f32)
    scale = jnp.reshape(2.0 / v_sqr, (1, 1)).astype(jnp.float32)

    # Lane-dense layout: zero-pad the feature axis to a multiple of 128 so
    # output stores are full-lane (no masked vst.msk partial stores).
    # TODO(synk): for D << 128, packing k=128//D logical rows per lane-row
    # would recover the remaining lane occupancy; padding is used instead.
    Dp = pl.cdiv(D, 128) * 128
    if Dp != D:
        x_p = jnp.pad(x, ((0, 0), (0, Dp - D)))
        v_p = jnp.pad(v, ((0, 0), (0, Dp - D)))
    else:
        x_p, v_p = x, v

    tile_b = _pick_tile_b(B, Dp, itemsize, gen)
    grid = (pl.cdiv(B, tile_b),)

    # bf16-native math only where the VPU supports it (v6e/v7x).
    native_low_precision = (x.dtype == jnp.bfloat16) and gen in ("v6e", "v7x")
    kernel = _make_kernel(native_low_precision)

    out_p = pl.pallas_call(
        kernel,
        out_shape=jax.ShapeDtypeStruct((B, Dp), x.dtype),
        grid=grid,
        in_specs=[
            # scale lives in SMEM: no per-step DMA or in-kernel reduction of v.
            pl.BlockSpec(memory_space=pltpu.MemorySpace.SMEM),
            # v is tiny and untiled: the same (1, Dp) block every grid step.
            pl.BlockSpec((1, Dp), lambda i: (0, 0)),
            # x streams through in (tile_b, Dp) batch tiles.
            pl.BlockSpec((tile_b, Dp), lambda i: (i, 0)),
        ],
        out_specs=pl.BlockSpec((tile_b, Dp), lambda i: (i, 0)),
        compiler_params=pltpu.CompilerParams(
            # Independent batch tiles -> megacore-shardable on v7x, harmless
            # on single-TC v5e/v6e.
            dimension_semantics=("parallel",),
            vmem_limit_bytes=vmem_limit,
        ),
        cost_estimate=pl.CostEstimate(
            flops=4 * B * Dp,
            transcendentals=0,
            bytes_accessed=2 * B * Dp * itemsize + Dp * itemsize,
        ),
    )(scale, v_p, x_p)

    out = out_p[:, :D] if Dp != D else out_p
    return out, logdet


# ---------------------------------------------------------------------------
# Reference & demo
# ---------------------------------------------------------------------------
def _reference(x, v):
    """Pure-JAX reference matching the PyTorch code (dense-H path)."""
    D = x.shape[1]
    outer = v.T * v
    v_sqr = jnp.sum(v * v)
    H = jnp.eye(D, dtype=x.dtype) - 2.0 * outer / v_sqr
    return (H @ x.T).T


if __name__ == "__main__":
    key = jax.random.PRNGKey(0)

    # Small shapes consistent with the module's (B x D) input.
    B, D = 8, 32
    kx, kv, kx2 = jax.random.split(key, 3)
    x = jax.random.normal(kx, (B, D), dtype=jnp.float32)
    v = jax.random.normal(kv, (1, D), dtype=jnp.float32)

    out, logdet = householder_flow(x, v, force_pallas=True)
    out = jax.block_until_ready(out)
    ref = _reference(x, v)
    assert jnp.allclose(logdet, 0.0)
    assert jnp.allclose(out, ref, atol=1e-5, rtol=1e-5), "mismatch vs reference"

    # Second small check exercising D-padding (D not a multiple of 128) and a
    # partial last batch tile.
    B2, D2 = 20, 200
    x2 = jax.random.normal(kx2, (B2, D2), dtype=jnp.float32)
    v2 = jax.random.normal(kv, (1, D2), dtype=jnp.float32)
    out2, _ = householder_flow(x2, v2, force_pallas=True)
    out2 = jax.block_until_ready(out2)
    ref2 = _reference(x2, v2)
    assert jnp.allclose(out2, ref2, atol=1e-4, rtol=1e-4), "padded-D mismatch"

    # Tiny-problem fused-JAX fallback path.
    out3, _ = householder_flow(x, v)
    assert jnp.allclose(jax.block_until_ready(out3), ref, atol=1e-5, rtol=1e-5)

    print("KERNEL_OK")
</pallas_src>

<mosaic_0001>
module attributes {stable_mosaic.version = 11 : i64} {
  func.func @kernel(%arg0: i32, %arg1: memref<1x1xf32, #tpu.memory_space<smem>>, %arg2: memref<1x128xf32, #tpu.memory_space<vmem>>, %arg3: memref<8x128xf32, #tpu.memory_space<vmem>>, %arg4: memref<8x128xf32, #tpu.memory_space<vmem>>) attributes {dimension_semantics = [#tpu.dimension_semantics<parallel>], iteration_bounds = array<i64: 1>, scalar_prefetch = 0 : i64, scratch_operands = 0 : i64, tpu.core_type = #tpu.core_type<tc>, window_params = [{transform_indices = @transform_0, window_bounds = array<i64: 1, 1>}, {pipeline_mode = #tpu.pipeline_mode<synchronous>, transform_indices = @transform_1, window_bounds = array<i64: 1, 128>}, {transform_indices = @transform_2, window_bounds = array<i64: 8, 128>}, {transform_indices = @transform_3, window_bounds = array<i64: 8, 128>}]} {
    %c0 = arith.constant 0 : index
    %c0_0 = arith.constant 0 : index
    %0 = memref.load %arg1[%c0, %c0_0] : memref<1x1xf32, #tpu.memory_space<smem>>
    %c0_1 = arith.constant 0 : index
    %c0_2 = arith.constant 0 : index
    %1 = vector.load %arg3[%c0_1, %c0_2] : memref<8x128xf32, #tpu.memory_space<vmem>>, vector<8x128xf32>
    %c0_3 = arith.constant 0 : index
    %c0_4 = arith.constant 0 : index
    %2 = vector.load %arg2[%c0_3, %c0_4] : memref<1x128xf32, #tpu.memory_space<vmem>>, vector<1x128xf32>
    %3 = vector.broadcast %2 : vector<1x128xf32> to vector<8x128xf32>
    %4 = arith.mulf %1, %3 : vector<8x128xf32>
    %cst = arith.constant dense<0.000000e+00> : vector<8xf32>
    %5 = vector.multi_reduction <add>, %4, %cst [1] : vector<8x128xf32> to vector<8xf32>
    %6 = vector.shape_cast %5 : vector<8xf32> to vector<8x1xf32>
    %7 = vector.broadcast %0 : f32 to vector<8x1xf32>
    %8 = arith.mulf %7, %6 : vector<8x1xf32>
    %9 = vector.broadcast %8 : vector<8x1xf32> to vector<8x128xf32>
    %10 = vector.broadcast %2 : vector<1x128xf32> to vector<8x128xf32>
    %11 = arith.mulf %9, %10 : vector<8x128xf32>
    %12 = arith.subf %1, %11 : vector<8x128xf32>
    %c0_5 = arith.constant 0 : index
    %c0_6 = arith.constant 0 : index
    %13 = vector.load %arg4[%c0_5, %c0_6] : memref<8x128xf32, #tpu.memory_space<vmem>>, vector<8x128xf32>
    tpu.vector_store %arg4[%c0_5, %c0_6], %12 {strides = array<i32>} : memref<8x128xf32, #tpu.memory_space<vmem>>, vector<8x128xf32>,
    return
  }
  func.func @transform_0(%arg0: i32) -> (i32, i32) {
    %c0_i32 = arith.constant 0 : i32
    %c0_i32_0 = arith.constant 0 : i32
    %c0_i32_1 = arith.constant 0 : i32
    return %c0_i32, %c0_i32_0 : i32, i32
  }
  func.func @transform_1(%arg0: i32) -> (i32, i32) {
    %c0_i32 = arith.constant 0 : i32
    %c0_i32_0 = arith.constant 0 : i32
    %c0_i32_1 = arith.constant 0 : i32
    return %c0_i32, %c0_i32_0 : i32, i32
  }
  func.func @transform_2(%arg0: i32) -> (i32, i32) {
    %c0_i32 = arith.constant 0 : i32
    %c0_i32_0 = arith.constant 0 : i32
    return %arg0, %c0_i32 : i32, i32
  }
  func.func @transform_3(%arg0: i32) -> (i32, i32) {
    %c0_i32 = arith.constant 0 : i32
    %c0_i32_0 = arith.constant 0 : i32
    return %arg0, %c0_i32 : i32, i32
  }
}

</mosaic_0001>

<llo_original>
// kernel: tpu_custom_call.1
$region0: #{tpu_custom_call.1}
  #allocation0 [shape = 'u32[]', space=smem, size = 0x4, offset = 0x4, fixed_abs, tag = 'smem constant byte address 0x4 - core index']
  #allocation1 [shape = 'u32[144,128]{1,0:T(1,128)}', space=vmem, size = 0x12000, scoped, tag = 'internal scratch']
  #allocation2 [shape = 'f32[1,1]{1,0:T(1,128)S(6)}', space=smem, size = 0x200, scoped, tag = 'scoped memory for tpu_custom_call.1']
  %s0 = inlined_call_operand.<no memory space> [shape: f32[1,1], index: 0, kind: input, shape index: {}]
  %s1 = inlined_call_operand.vmem [shape: f32[1,128], index: 1, kind: input, shape index: {}]
  %s2 = inlined_call_operand.hbm [shape: f32[8,128], index: 2, kind: input, shape index: {}]
  %s3 = inlined_call_operand.hbm [shape: f32[8,128], index: 3, kind: output, shape index: {}]
  %s4 = sld [smem:[#allocation0]]
  $region26: #{tpu_custom_call.1} parent=0
    _
  %s6 = ssub.s32 1, %s4
  %s7 = scalar_select 0, %s6, %s4
  %8 = sst [smem:[#allocation2]] %s0
  $region1: #{tpu_custom_call.1} parent=0
    #allocation3 [shape = 'u8[4096]{0}', space=vmem, size = 0x1000, scoped, tag = 'input window, operand 2, single buffered']
    #allocation4 [shape = 's32[1]{0}', space=sflag, size = 0x4, scoped, tag = 'scoped memory for tpu_custom_call.1']
    #allocation5 [shape = 's32[1]{0}', space=sflag, size = 0x4, scoped, tag = 'scoped memory for tpu_custom_call.1']
    #allocation6 [shape = 'u8[4096]{0}', space=vmem, size = 0x1000, scoped, tag = 'output window, operand 0, single buffered']
    %9 = vsyncpa [#allocation4], 0
    %10 = vsyncpa [#allocation5], 0
    // Predicated region
    $region2: #{tpu_custom_call.1} parent=1 // pred_check
      _
    $region3: #{tpu_custom_call.1} parent=1 // pred_check_branch
      %12 = sbr.rel (0) target = $region5
    $region4: #{tpu_custom_call.1} parent=1 // pred_region
      _
    $region5: #{tpu_custom_call.1} parent=1 // pred_fallthru
      _
    // Predicated region
    $region6: #{tpu_custom_call.1} parent=1 // pred_check
      _
    $region7: #{tpu_custom_call.1} parent=1 // pred_check_branch
      %14 = sbr.rel (0) target = $region9
    $region8: #{tpu_custom_call.1} parent=1 // pred_region
      _
    $region9: #{tpu_custom_call.1} parent=1 // pred_fallthru
      _
    // Predicated region
    $region10: #{tpu_custom_call.1} parent=1 // pred_check
      _
    $region11: #{tpu_custom_call.1} parent=1 // pred_check_branch
      %16 = sbr.rel (0) target = $region13
    $region12: #{tpu_custom_call.1} parent=1 // pred_region
      %s18 = ssub.s32 128, 128
      %19 = vsyncadd [#allocation4], %s18
      %s21 = sshll.u32 [#allocation3], 4
      %s22 = int_to_ptr.vmem [resolvable:$true] %s21
      %24 = dma.hbm_to_vmem [thread:$0]  %s2, 128, %s22, [#allocation4]
    $region13: #{tpu_custom_call.1} parent=1 // pred_fallthru
      _
    // Predicated region
    $region14: #{tpu_custom_call.1} parent=1 // pred_check
      _
    $region15: #{tpu_custom_call.1} parent=1 // pred_check_branch
      %26 = sbr.rel (0) target = $region17
    $region16: #{tpu_custom_call.1} parent=1 // pred_region
      %27 = dma.done [#allocation4], 128
    $region17: #{tpu_custom_call.1} parent=1 // pred_fallthru
      _
    %s28 = sld [smem:[#allocation2]]
    %v29 = vld [vmem:[#allocation3] sm:$0xff]
    %v30 = vld [vmem:[%s1] sm:$0x1]
    %v32 = vlaneseq
    %v33 = vshrl.u32 %v32, 7
    %v34 = vsub.s32 0, %v33
    %v35 = vrot.slane %v30, %v34
    %v37 = vmul.f32 %v29, %v35
    %38 = vadd.xlane.f32.xlu0 %v37
    %v39 = vpop.xlane.xlu0 %38
    %v40 = vstv %s28
    %v41 = vmul.f32 %v40, %v39
    %v42 = vmul.f32 %v41, %v35
    %v43 = vsub.f32 %v29, %v42
    %44 = vst [vmem:[#allocation6] sm:$0xff] %v43
    // Predicated region
    $region18: #{tpu_custom_call.1} parent=1 // pred_check
      _
    $region19: #{tpu_custom_call.1} parent=1 // pred_check_branch
      %46 = sbr.rel (0) target = $region21
    $region20: #{tpu_custom_call.1} parent=1 // pred_region
      %s48 = ssub.s32 128, 128
      %49 = vsyncadd [#allocation5], %s48
      %s51 = sshll.u32 [#allocation6], 4
      %s52 = int_to_ptr.vmem [resolvable:$true] %s51
      %54 = dma.vmem_to_hbm [thread:$0]  %s52, 128, %s3, [#allocation5]
    $region21: #{tpu_custom_call.1} parent=1 // pred_fallthru
      _
    // Predicated region
    $region22: #{tpu_custom_call.1} parent=1 // pred_check
      _
    $region23: #{tpu_custom_call.1} parent=1 // pred_check_branch
      %56 = sbr.rel (0) target = $region25
    $region24: #{tpu_custom_call.1} parent=1 // pred_region
      %57 = dma.done [#allocation5], 128
    $region25: #{tpu_custom_call.1} parent=1 // pred_fallthru
      _
    %58 = vsyncpa [#allocation4], 1
    %59 = vsyncpa [#allocation5], 1

</llo_original>
